<compile_context>
chip_gen: v7x
topology: tpu7x:2x2x1
jax: 0.10.0
libtpu: 0.0.40
codegen_flags: <defaults>
</compile_context>

<pallas_src>
import numpy as np
import jax
import jax.numpy as jnp
from jax.experimental import pallas as pl
from jax.experimental.pallas import tpu as pltpu

EPSILON = float(np.finfo(np.float32).eps)


def _round_up(x, m):
    return ((x + m - 1) // m) * m


def _cdiv(a, b):
    return -(-a // b)


def _vmem_budgets():
    """Generation-aware VMEM budgets (v5e/v6e: 128 MiB, v7x: 64 MiB)."""
    default = 64 * 1024 * 1024
    try:
        info = pltpu.get_tpu_info()
        phys = int(getattr(info, "vmem_capacity_bytes", default))
    except Exception:
        phys = default
    if phys <= 0:
        phys = default
    phys = max(32 * 1024 * 1024, min(phys, 128 * 1024 * 1024))
    vmem_limit = (phys * 3) // 4        # 96 MiB on v5e/v6e, 48 MiB on v7x
    block_budget = phys // 2            # 64 MiB on v5e/v6e, 32 MiB on v7x
    tc_max = 512 if phys <= 64 * 1024 * 1024 else 1024
    return vmem_limit, block_budget, tc_max


def _pick_g(bc, per_row_bytes, budget_bytes):
    """Rows per block from a per-row VMEM cost and a budget."""
    g = max(1, int(budget_bytes) // max(1, int(per_row_bytes)))
    g = min(bc, g)
    if bc >= 2:
        # keep >= 2 row blocks so the "parallel" row axis can shard across
        # v7x's two TensorCores (negligible cost on single-TC chips)
        g = min(g, _cdiv(bc, 2))
    if g >= 8:
        g = (g // 8) * 8
    return max(1, g)


def _pick_time_chunk_cumulative(f, t, dsize, budget, tc_max):
    """Largest time chunk (<= tc_max, multiple of 128 unless == t) that fits
    the per-g=1 block set (2x in + 2x out + resident tri/invcnt + f32 temps)."""
    def cost(tcv):
        return 2 * 4 * tcv * tcv + 2 * 4 * tcv + 4 * f * tcv * dsize + 6 * 4 * tcv
    if t <= tc_max and cost(t) <= budget:
        return t
    tc = min(tc_max, _round_up(t, 128))
    while tc > 128 and cost(tc) > budget:
        tc -= 128
    return t if tc >= t else tc


def _pick_time_chunk_global(f, t, dsize, budget, tc_max):
    def cost(tcv):
        return 4 * f * tcv * dsize + 4 * 4 * tcv
    tc = min(tc_max, _round_up(t, 128))
    while tc > 128 and cost(tc) > budget:
        tc -= 128
    return t if tc >= t else tc


# --------------------------------------------------------------------------
# Kernels
# --------------------------------------------------------------------------

def _make_global_kernel(n_freqs, use_mid_freq_mu, eps):
    """Non-cumulative, fused: one scalar mu per (b,c) spectrogram."""
    mid = n_freqs // 2 - 1

    def kernel(x_ref, o_ref):
        x = x_ref[...]                                        # (G, F, T), input dtype
        if use_mid_freq_mu:
            step = x[:, mid, :].astype(jnp.float32)           # (G, T)
        else:
            step = jnp.mean(x, axis=1, dtype=jnp.float32)     # upcast inside reduce
        mu = jnp.mean(step, axis=-1, keepdims=True)           # (G, 1), f32
        inv = pl.reciprocal(mu + eps)                         # exact, eps in f32
        o_ref[...] = (x * inv[:, None, :].astype(x.dtype)).astype(o_ref.dtype)
    return kernel


def _make_rowsum_kernel(n_freqs, use_mid_freq_mu, n_frames, tc):
    """Pass 1 of the chunked non-cumulative fallback: per-row time sums."""
    mid = n_freqs // 2 - 1

    def kernel(x_ref, sum_ref):
        j = pl.program_id(1)

        @pl.when(j == 0)
        def _():
            sum_ref[...] = jnp.zeros_like(sum_ref)

        x = x_ref[...]                                        # (G, F, Tc)
        if use_mid_freq_mu:
            step = x[:, mid, :].astype(jnp.float32)           # (G, Tc)
        else:
            step = jnp.mean(x, axis=1, dtype=jnp.float32)
        # Mask the stale tail of a partial final time chunk before reducing.
        col = jax.lax.broadcasted_iota(jnp.int32, step.shape, 1)
        step = jnp.where(j * tc + col < n_frames, step, 0.0)
        sum_ref[...] += jnp.sum(step, axis=-1)[:, None, None]
    return kernel


def _norm_kernel(x_ref, inv_ref, o_ref):
    """Pass 2 of the chunked non-cumulative fallback: broadcast normalize."""
    x = x_ref[...]
    o_ref[...] = (x * inv_ref[...].astype(x.dtype)).astype(o_ref.dtype)


def _make_cumulative_kernel(n_freqs, use_mid_freq_mu, eps):
    """Cumulative: running mean along time, chunked over the trailing axis."""
    mid = n_freqs // 2 - 1

    def kernel(x_ref, tri_ref, invcnt_ref, o_ref, carry_ref):
        j = pl.program_id(1)

        @pl.when(j == 0)
        def _():
            carry_ref[...] = jnp.zeros_like(carry_ref)

        x = x_ref[...]                                        # (G, F, Tc)
        if use_mid_freq_mu:
            step = x[:, mid, :].astype(jnp.float32)           # (G, Tc)
        else:
            step = jnp.mean(x, axis=1, dtype=jnp.float32)

        # Within-chunk prefix sums via the resident upper-triangular matmul,
        # plus the running total carried across chunks.  Stale data in the
        # tail of a partial final chunk only ever reaches output columns that
        # the pipeline discards on write-back.
        cs = carry_ref[...] + jnp.dot(step, tri_ref[...],
                                      preferred_element_type=jnp.float32)
        carry_ref[...] = cs[:, -1:]                           # running total
        mu = cs * invcnt_ref[...]                             # (G, Tc) * (1, Tc)
        inv = pl.reciprocal(mu + eps)                         # f32, eps in f32
        o_ref[...] = (x * inv[:, None, :].astype(x.dtype)).astype(o_ref.dtype)
    return kernel


# --------------------------------------------------------------------------
# Wrapper
# --------------------------------------------------------------------------

def cumulative_mag_spectral_norm(x, *, cumulative=False, use_mid_freq_mu=False,
                                 eps=EPSILON):
    """x: [B, C, F, T] -> normalized [B, C, F, T]."""
    assert x.ndim == 4, "CumulativeMagSpectralNorm only supports 4D input."
    b, c, f, t = x.shape
    bc = b * c
    x_flat = x.reshape(bc, f, t)
    dsize = np.dtype(x.dtype).itemsize
    vmem_limit, block_budget, tc_max = _vmem_budgets()

    if cumulative:
        tc = _pick_time_chunk_cumulative(f, t, dsize, block_budget, tc_max)
        n_chunks = _cdiv(t, tc)
        # Residents (double-buffered): (tc, tc) tri + (1, tc) inv-count table.
        resident = 2 * 4 * tc * tc + 2 * 4 * tc
        # Per row of G: 2x in + 2x out blocks + f32 row temps (step/cs/mu/inv).
        per_row = 4 * f * tc * dsize + 6 * 4 * tc
        g = _pick_g(bc, per_row, block_budget - resident)
        n_row_blocks = _cdiv(bc, g)

        # Hoisted resident constants (built once, constant index_map).
        tri = (jnp.arange(tc)[:, None] <= jnp.arange(tc)[None, :]).astype(
            jnp.float32)                                          # (Tc, Tc)
        inv_counts = (1.0 / jnp.arange(1, t + 1, dtype=jnp.float32)
                      ).reshape(1, t)                             # (1, T)

        kernel = _make_cumulative_kernel(f, use_mid_freq_mu, eps)
        out = pl.pallas_call(
            kernel,
            out_shape=jax.ShapeDtypeStruct((bc, f, t), x.dtype),
            grid_spec=pltpu.PrefetchScalarGridSpec(
                num_scalar_prefetch=0,
                grid=(n_row_blocks, n_chunks),
                in_specs=[
                    pl.BlockSpec((g, f, tc), lambda i, j: (i, 0, j)),
                    pl.BlockSpec((tc, tc), lambda i, j: (0, 0)),   # resident
                    pl.BlockSpec((1, tc), lambda i, j: (0, j)),
                ],
                out_specs=pl.BlockSpec((g, f, tc), lambda i, j: (i, 0, j)),
                scratch_shapes=[pltpu.VMEM((g, 1), jnp.float32)],  # cumsum carry
            ),
            compiler_params=pltpu.CompilerParams(
                dimension_semantics=("parallel", "arbitrary"),
                vmem_limit_bytes=vmem_limit),
        )(x_flat, tri, inv_counts)
        return out.reshape(b, c, f, t)

    # ---- non-cumulative -------------------------------------------------
    fused_per_row = 4 * f * t * dsize + 4 * 4 * t
    if fused_per_row <= block_budget:
        g = _pick_g(bc, fused_per_row, block_budget)
        n_row_blocks = _cdiv(bc, g)
        kernel = _make_global_kernel(f, use_mid_freq_mu, eps)
        out = pl.pallas_call(
            kernel,
            out_shape=jax.ShapeDtypeStruct((bc, f, t), x.dtype),
            grid_spec=pltpu.PrefetchScalarGridSpec(
                num_scalar_prefetch=0,
                grid=(n_row_blocks,),
                in_specs=[pl.BlockSpec((g, f, t), lambda i: (i, 0, 0))],
                out_specs=pl.BlockSpec((g, f, t), lambda i: (i, 0, 0)),
            ),
            compiler_params=pltpu.CompilerParams(
                dimension_semantics=("parallel",),
                vmem_limit_bytes=vmem_limit),
        )(x_flat)
        return out.reshape(b, c, f, t)

    # Fallback for very long signals: two streamed passes (sum, normalize).
    tc = _pick_time_chunk_global(f, t, dsize, block_budget, tc_max)
    n_chunks = _cdiv(t, tc)

    # Pass 1: per-row sums of the step signal (tiny (bc,1,1) f32 output).
    per_row1 = 2 * f * tc * dsize + 4 * 4 * tc + 8
    g1 = _pick_g(bc, per_row1, block_budget)
    sums = pl.pallas_call(
        _make_rowsum_kernel(f, use_mid_freq_mu, t, tc),
        out_shape=jax.ShapeDtypeStruct((bc, 1, 1), jnp.float32),
        grid_spec=pltpu.PrefetchScalarGridSpec(
            num_scalar_prefetch=0,
            grid=(_cdiv(bc, g1), n_chunks),
            in_specs=[pl.BlockSpec((g1, f, tc), lambda i, j: (i, 0, j))],
            out_specs=pl.BlockSpec((g1, 1, 1), lambda i, j: (i, 0, 0)),
        ),
        compiler_params=pltpu.CompilerParams(
            dimension_semantics=("parallel", "arbitrary"),
            vmem_limit_bytes=vmem_limit),
    )(x_flat)
    inv = 1.0 / (sums / float(t) + eps)            # (bc, 1, 1) f32 — negligible

    # Pass 2: normalize, streamed in (g, f, tc) blocks.
    per_row2 = 4 * f * tc * dsize + 8
    g2 = _pick_g(bc, per_row2, block_budget)
    out = pl.pallas_call(
        _norm_kernel,
        out_shape=jax.ShapeDtypeStruct((bc, f, t), x.dtype),
        grid_spec=pltpu.PrefetchScalarGridSpec(
            num_scalar_prefetch=0,
            grid=(_cdiv(bc, g2), n_chunks),
            in_specs=[pl.BlockSpec((g2, f, tc), lambda i, j: (i, 0, j)),
                      pl.BlockSpec((g2, 1, 1), lambda i, j: (i, 0, 0))],
            out_specs=pl.BlockSpec((g2, f, tc), lambda i, j: (i, 0, j)),
        ),
        compiler_params=pltpu.CompilerParams(
            dimension_semantics=("parallel", "parallel"),
            vmem_limit_bytes=vmem_limit),
    )(x_flat, inv)
    return out.reshape(b, c, f, t)


# --------------------------------------------------------------------------
# Reference & self-test
# --------------------------------------------------------------------------

def _reference(x, *, cumulative=False, use_mid_freq_mu=False, eps=EPSILON):
    b, c, f, t = x.shape
    xf = x.reshape(b * c, f, t)
    if use_mid_freq_mu:
        step = xf[:, f // 2 - 1, :]
    else:
        step = jnp.mean(xf, axis=1)
    if cumulative:
        csum = jnp.cumsum(step, axis=-1)
        counts = jnp.arange(1, t + 1, dtype=x.dtype).reshape(1, t)
        mu = (csum / counts).reshape(b * c, 1, t)
    else:
        mu = jnp.mean(step, axis=-1).reshape(b * c, 1, 1)
    return (xf / (mu + eps)).reshape(b, c, f, t)


if __name__ == "__main__":
    key = jax.random.PRNGKey(0)
    B, C, F, T = 2, 4, 16, 16
    # magnitude spectrogram -> non-negative values
    x = jnp.abs(jax.random.normal(key, (B, C, F, T), dtype=jnp.float32))

    ok = True
    for cumulative in (False, True):
        for use_mid in (False, True):
            out = cumulative_mag_spectral_norm(
                x, cumulative=cumulative, use_mid_freq_mu=use_mid)
            out = jax.block_until_ready(out)
            ref = _reference(x, cumulative=cumulative, use_mid_freq_mu=use_mid)
            ok = ok and bool(jnp.allclose(out, ref, rtol=1e-5, atol=1e-5))

    if ok:
        print("KERNEL_OK")
    else:
        print("KERNEL_MISMATCH")
</pallas_src>

<mosaic_0001>
module attributes {stable_mosaic.version = 11 : i64} {
  func.func @kernel(%arg0: i32, %arg1: memref<4x16x16xf32, #tpu.memory_space<vmem>>, %arg2: memref<4x16x16xf32, #tpu.memory_space<vmem>>) attributes {dimension_semantics = [#tpu.dimension_semantics<parallel>], iteration_bounds = array<i64: 2>, scalar_prefetch = 0 : i64, scratch_operands = 0 : i64, tpu.core_type = #tpu.core_type<tc>, window_params = [{transform_indices = @transform_0, window_bounds = array<i64: 4, 16, 16>}, {transform_indices = @transform_1, window_bounds = array<i64: 4, 16, 16>}]} {
    %c0 = arith.constant 0 : index
    %c0_0 = arith.constant 0 : index
    %c0_1 = arith.constant 0 : index
    %0 = vector.load %arg1[%c0, %c0_0, %c0_1] : memref<4x16x16xf32, #tpu.memory_space<vmem>>, vector<4x16x16xf32>
    %cst = arith.constant dense<0.000000e+00> : vector<4x16xf32>
    %1 = vector.multi_reduction <add>, %0, %cst [1] : vector<4x16x16xf32> to vector<4x16xf32>
    %cst_2 = arith.constant 1.600000e+01 : f32
    %2 = vector.broadcast %cst_2 : f32 to vector<4x16xf32>
    %3 = arith.divf %1, %2 : vector<4x16xf32>
    %cst_3 = arith.constant dense<0.000000e+00> : vector<4xf32>
    %4 = vector.multi_reduction <add>, %3, %cst_3 [1] : vector<4x16xf32> to vector<4xf32>
    %5 = vector.shape_cast %4 : vector<4xf32> to vector<4x1xf32>
    %cst_4 = arith.constant 1.600000e+01 : f32
    %6 = vector.broadcast %cst_4 : f32 to vector<4x1xf32>
    %7 = arith.divf %5, %6 : vector<4x1xf32>
    %cst_5 = arith.constant 1.1920929E-7 : f32
    %8 = vector.broadcast %cst_5 : f32 to vector<4x1xf32>
    %9 = arith.addf %7, %8 : vector<4x1xf32>
    %10 = tpu.reciprocal %9 : vector<4x1xf32> -> vector<4x1xf32>
    %11 = vector.shape_cast %10 : vector<4x1xf32> to vector<4x1x1xf32>
    %12 = vector.broadcast %11 : vector<4x1x1xf32> to vector<4x16x16xf32>
    %13 = arith.mulf %0, %12 : vector<4x16x16xf32>
    %c0_6 = arith.constant 0 : index
    %c0_7 = arith.constant 0 : index
    %c0_8 = arith.constant 0 : index
    %14 = vector.load %arg2[%c0_6, %c0_7, %c0_8] : memref<4x16x16xf32, #tpu.memory_space<vmem>>, vector<4x16x16xf32>
    tpu.vector_store %arg2[%c0_6, %c0_7, %c0_8], %13 {strides = array<i32>} : memref<4x16x16xf32, #tpu.memory_space<vmem>>, vector<4x16x16xf32>,
    return
  }
  func.func @transform_0(%arg0: i32) -> (i32, i32, i32) {
    %c0_i32 = arith.constant 0 : i32
    %c0_i32_0 = arith.constant 0 : i32
    %c0_i32_1 = arith.constant 0 : i32
    return %arg0, %c0_i32, %c0_i32_0 : i32, i32, i32
  }
  func.func @transform_1(%arg0: i32) -> (i32, i32, i32) {
    %c0_i32 = arith.constant 0 : i32
    %c0_i32_0 = arith.constant 0 : i32
    %c0_i32_1 = arith.constant 0 : i32
    return %arg0, %c0_i32, %c0_i32_0 : i32, i32, i32
  }
}

</mosaic_0001>

<llo_original>
// kernel: tpu_custom_call.1
$region0: #{tpu_custom_call.1}
  #allocation0 [shape = 'u32[]', space=smem, size = 0x4, offset = 0x4, fixed_abs, tag = 'smem constant byte address 0x4 - core index']
  #allocation1 [shape = 'u32[144,128]{1,0:T(1,128)}', space=vmem, size = 0x12000, scoped, tag = 'internal scratch']
  %s0 = inlined_call_operand.hbm [shape: f32[8,16,16], index: 0, kind: input, shape index: {}]
  %s1 = inlined_call_operand.hbm [shape: f32[8,16,16], index: 1, kind: output, shape index: {}]
  %s2 = sld [smem:[#allocation0]]
  $region41: #{tpu_custom_call.1} parent=0
    _
  %s4 = ssub.s32 1, %s2
  %s5 = scalar_select 0, %s4, %s2
  $region1: #{tpu_custom_call.1} parent=0
    #allocation2 [shape = 'u8[65536]{0}', space=vmem, size = 0x10000, scoped, tag = 'input window, operand 0']
    #allocation3 [shape = 's32[2]{0}', space=sflag, size = 0x8, scoped, tag = 'scoped memory for tpu_custom_call.1']
    #allocation4 [shape = 's32[2]{0}', space=sflag, size = 0x8, scoped, tag = 'scoped memory for tpu_custom_call.1']
    #allocation5 [shape = 'u8[65536]{0}', space=vmem, size = 0x10000, scoped, tag = 'output window, operand 0']
    %6 = vsyncpa [#allocation3], 0
    %s7 = scalar_lea.sflag [#allocation3], 1
    %8 = vsyncpa %s7, 0
    %9 = vsyncpa [#allocation4], 0
    %s10 = scalar_lea.sflag [#allocation4], 1
    %11 = vsyncpa %s10, 0
    loop: start=0, step=1, limit=4
    $region2: #{tpu_custom_call.1} parent=1 // loop_pre_header
      _
    $region3: #{tpu_custom_call.1} parent=1 // loop_header
      %s13 = sphi 0, %s17
      %p14 = scmp.ge.s32.totalorder %s13, 4
      %s23 = sphi 0, %s25
      %s26 = sphi 0, %s23
      %s27 = sphi 0, %s26
      %s43 = sphi 0, %s27
      %s49 = sphi 0, %s51
      %s52 = sphi 0, %s49
      %s53 = sphi 0, %s52
      %s69 = sphi 0, %s53
    $region4: #{tpu_custom_call.1} parent=1 // loop_header_branch
      %16 = sbr.rel (%p14) target = $region8
    $region5: #{tpu_custom_call.1} parent=1 // loop_body
      %s18 = ssub.s32 %s13, 1
      %s19 = ssub.s32 %s13, 2
      %s20 = sadd.s32 %s13, 1
      %s21 = ssub.s32 %s13, %s20
      %p22 = scmp.eq.s32.totalorder %s21, 0
      %s24 = sadd.s32 %s23, 1
      %s25 = scalar_select %p22, %s23, %s24
      %p28 = pneg %p22
      %p29 = scmp.eq.s32.totalorder %s13, 1
      %p30 = por %p28, %p29
      %p31 = scmp.ne.s32.totalorder %s23, %s26
      %p32 = scmp.eq.s32.totalorder %s13, 0
      %p33 = por %p31, %p32
      %p34 = scmp.ne.s32.totalorder %s23, %s26
      %p35 = scmp.eq.s32.totalorder %s18, 1
      %p36 = por %p34, %p35
      %p37 = scmp.ne.s32.totalorder %s26, %s27
      %p38 = scmp.eq.s32.totalorder %s18, 0
      %p39 = por %p37, %p38
      %p40 = scmp.ne.s32.totalorder %s26, %s27
      %p41 = scmp.eq.s32.totalorder %s19, 1
      %p42 = por %p40, %p41
      %p44 = scmp.ne.s32.totalorder %s27, %s43
      %p45 = scmp.eq.s32.totalorder %s19, 0
      %p46 = por %p44, %p45
      %s47 = ssub.s32 %s13, %s20
      %p48 = scmp.eq.s32.totalorder %s47, 0
      %s50 = sadd.s32 %s49, 1
      %s51 = scalar_select %p48, %s49, %s50
      %p54 = pneg %p48
      %p55 = scmp.eq.s32.totalorder %s13, 1
      %p56 = por %p54, %p55
      %p57 = scmp.ne.s32.totalorder %s49, %s52
      %p58 = scmp.eq.s32.totalorder %s13, 0
      %p59 = por %p57, %p58
      %p60 = scmp.ne.s32.totalorder %s49, %s52
      %p61 = scmp.eq.s32.totalorder %s18, 1
      %p62 = por %p60, %p61
      %p63 = scmp.ne.s32.totalorder %s52, %s53
      %p64 = scmp.eq.s32.totalorder %s18, 0
      %p65 = por %p63, %p64
      %p66 = scmp.ne.s32.totalorder %s52, %s53
      %p67 = scmp.eq.s32.totalorder %s19, 1
      %p68 = por %p66, %p67
      %p70 = scmp.ne.s32.totalorder %s53, %s69
      %p71 = scmp.eq.s32.totalorder %s19, 0
      %p72 = por %p70, %p71
      %p73 = scmp.le.s32.totalorder 1, %s13
      %p74 = scmp.lt.s32.totalorder %s13, 3
      %p75 = pnand %p73, %p74
      %p76 = pneg %p75
      // Predicated region
      $region9: #{tpu_custom_call.1} parent=5 // pred_check
        _
      $region10: #{tpu_custom_call.1} parent=5 // pred_check_branch
        %78 = sbr.rel (%p75) target = $region12
      $region11: #{tpu_custom_call.1} parent=5 // pred_region
        %s79 = ssub.s32 %s13, 1
      $region12: #{tpu_custom_call.1} parent=5 // pred_fallthru
        _
      %p80 = scmp.lt.s32.totalorder %s13, 2
      // Predicated region
      $region13: #{tpu_custom_call.1} parent=5 // pred_check
        %p81 = pneg %p80
      $region14: #{tpu_custom_call.1} parent=5 // pred_check_branch
        %83 = sbr.rel (%p81) target = $region16
      $region15: #{tpu_custom_call.1} parent=5 // pred_region
        // Predicated region
        $region17: #{tpu_custom_call.1} parent=15 // pred_check
          %p84 = pneg %p33
        $region18: #{tpu_custom_call.1} parent=15 // pred_check_branch
          %86 = sbr.rel (%p84) target = $region20
        $region19: #{tpu_custom_call.1} parent=15 // pred_region
          %s87 = sand.u32 %s23, 1
          %s88 = scalar_lea.sflag [#allocation3], %s87
          %s89 = sand.u32 %s23, 1
          %s90 = smul.addr %s89, 64
          %s91 = scalar_lea.vmem [#allocation2], %s90
          %s92 = smul.u32 4, %s13
          %s94 = ssub.s32 1024, 1024
          %95 = vsyncadd %s88, %s94
          %s96 = smul.addr %s92, 2
          %s97 = smul.addr %s96, 128
          %s98 = scalar_lea.hbm %s0, %s97
          %s99 = sshll.u32 %s91, 4
          %s100 = int_to_ptr.vmem [resolvable:$true] %s99
          %105 = dma.hbm_to_vmem [thread:$0]  %s98, 1024, %s100, %s88, 128, 128, 8
        $region20: #{tpu_custom_call.1} parent=15 // pred_fallthru
          _
      $region16: #{tpu_custom_call.1} parent=5 // pred_fallthru
        _
      %p106 = scmp.le.s32.totalorder 1, %s13
      %p107 = scmp.lt.s32.totalorder %s13, 3
      %p108 = pnand %p106, %p107
      %p109 = pneg %p108
      // Predicated region
      $region21: #{tpu_custom_call.1} parent=5 // pred_check
        _
      $region22: #{tpu_custom_call.1} parent=5 // pred_check_branch
        %111 = sbr.rel (%p108) target = $region24
      $region23: #{tpu_custom_call.1} parent=5 // pred_region
        %s112 = ssub.s32 %s13, 1
        %s113 = sand.u32 %s26, 1
        %s114 = scalar_lea.sflag [#allocation3], %s113
        %s115 = sand.u32 %s26, 1
        %s116 = smul.addr %s115, 64
        %s117 = scalar_lea.vmem [#allocation2], %s116
        // Predicated region
        $region25: #{tpu_custom_call.1} parent=23 // pred_check
          %p118 = pneg %p39
        $region26: #{tpu_custom_call.1} parent=23 // pred_check_branch
          %120 = sbr.rel (%p118) target = $region28
        $region27: #{tpu_custom_call.1} parent=23 // pred_region
          %121 = dma.done %s114, 1024
        $region28: #{tpu_custom_call.1} parent=23 // pred_fallthru
          _
        %s122 = sand.u32 %s26, 1
        %s123 = scalar_lea.sflag [#allocation3], %s122
        %s124 = sand.u32 %s26, 1
        %s125 = smul.addr %s124, 64
        %s126 = scalar_lea.vmem [#allocation2], %s125
        %p127 = pneg %p39
        %p128 = pneg %p36
        %p129 = pneg %p65
        %p130 = pneg %p62
        %s131 = sand.u32 %s52, 1
        %s132 = scalar_lea.sflag [#allocation4], %s131
        %s133 = sand.u32 %s52, 1
        %s134 = smul.addr %s133, 64
        %s135 = scalar_lea.vmem [#allocation5], %s134
        %s136 = smul.u32 4, %s18
        %s137 = smul.u32 4, %s18
        %v138 = vld [vmem:[%s117] sm:$0xff]
        %v139 = vld [vmem:[%s117 + $0x8] sm:$0xff]
        %v140 = vld [vmem:[%s117 + $0x10] sm:$0xff]
        %v141 = vld [vmem:[%s117 + $0x18] sm:$0xff]
        %v142 = vld [vmem:[%s117 + $0x20] sm:$0xff]
        %v143 = vld [vmem:[%s117 + $0x28] sm:$0xff]
        %v144 = vld [vmem:[%s117 + $0x30] sm:$0xff]
        %v145 = vld [vmem:[%s117 + $0x38] sm:$0xff]
        %vm146 = vcmask 130048
        %v147 = vsel %vm146, %v138, 0.0
        %v148 = vsel %vm146, %v139, 0.0
        %v149 = vadd.f32 %v147, %v148
        %v150 = vrot.slane %v149, 4
        %v151 = vadd.f32 %v149, %v150
        %v152 = vrot.slane %v151, 2
        %v153 = vadd.f32 %v151, %v152
        %v154 = vrot.slane %v153, 1
        %v155 = vadd.f32 %v153, %v154
        %v156 = vsel %vm146, %v140, 0.0
        %v157 = vsel %vm146, %v141, 0.0
        %v158 = vadd.f32 %v156, %v157
        %v159 = vrot.slane %v158, 4
        %v160 = vadd.f32 %v158, %v159
        %v161 = vrot.slane %v160, 2
        %v162 = vadd.f32 %v160, %v161
        %v163 = vrot.slane %v162, 1
        %v164 = vadd.f32 %v162, %v163
        %v165 = vsel %vm146, %v142, 0.0
        %v166 = vsel %vm146, %v143, 0.0
        %v167 = vadd.f32 %v165, %v166
        %v168 = vrot.slane %v167, 4
        %v169 = vadd.f32 %v167, %v168
        %v170 = vrot.slane %v169, 2
        %v171 = vadd.f32 %v169, %v170
        %v172 = vrot.slane %v171, 1
        %v173 = vadd.f32 %v171, %v172
        %v174 = vsel %vm146, %v144, 0.0
        %v175 = vsel %vm146, %v145, 0.0
        %v176 = vadd.f32 %v174, %v175
        %v177 = vrot.slane %v176, 4
        %v178 = vadd.f32 %v176, %v177
        %v179 = vrot.slane %v178, 2
        %v180 = vadd.f32 %v178, %v179
        %v181 = vrot.slane %v180, 1
        %v182 = vadd.f32 %v180, %v181
        %v183 = vrcp.pop 16.0
        %v184 = vmul.f32 %v155, %v183
        %v185 = vmul.f32 %v164, %v183
        %v186 = vmul.f32 %v173, %v183
        %v187 = vmul.f32 %v182, %v183
        %vm192 = vcmask 1041409
        %v193 = vsel %vm192, %v185, %v184
        %vm194 = vcmask 1042434
        %v195 = vsel %vm194, %v186, %v193
        %vm196 = vcmask 1043459
        %v197 = vsel %vm196, %v187, %v195
        %vm199 = vcmask 125952
        %v200 = vsel %vm199, %v197, 0.0
        %201 = vadd.xlane.f32.xlu0 %v200
        %v202 = vpop.xlane.xlu0 %201
        %v203 = vmul.f32 %v202, %v183
        %v204 = vadd.f32 %v203, 1.1920929e-07
        %v205 = vrcp.pop %v204
        %v207 = vlaneseq
        %v208 = vshrl.u32 %v207, 7
        %v209 = vsub.s32 0, %v208
        %v210 = vrot.slane %v205, %v209
        %v211 = vlaneseq
        %v212 = vshrl.u32 %v211, 7
        %v213 = vsub.s32 1, %v212
        %v214 = vrot.slane %v205, %v213
        %v215 = vlaneseq
        %v216 = vshrl.u32 %v215, 7
        %v217 = vsub.s32 2, %v216
        %v218 = vrot.slane %v205, %v217
        %v219 = vlaneseq
        %v220 = vshrl.u32 %v219, 7
        %v221 = vsub.s32 3, %v220
        %v222 = vrot.slane %v205, %v221
        %v227 = vmul.f32 %v138, %v210
        %v228 = vmul.f32 %v139, %v210
        %v229 = vmul.f32 %v140, %v214
        %v230 = vmul.f32 %v141, %v214
        %v231 = vmul.f32 %v142, %v218
        %v232 = vmul.f32 %v143, %v218
        %v233 = vmul.f32 %v144, %v222
        %v234 = vmul.f32 %v145, %v222
        %235 = vst.msk [vmem:[%s135] sm:$0xff] %vm146, %v227
        %236 = vst.msk [vmem:[%s135 + $0x8] sm:$0xff] %vm146, %v228
        %237 = vst.msk [vmem:[%s135 + $0x10] sm:$0xff] %vm146, %v229
        %238 = vst.msk [vmem:[%s135 + $0x18] sm:$0xff] %vm146, %v230
        %239 = vst.msk [vmem:[%s135 + $0x20] sm:$0xff] %vm146, %v231
        %240 = vst.msk [vmem:[%s135 + $0x28] sm:$0xff] %vm146, %v232
        %241 = vst.msk [vmem:[%s135 + $0x30] sm:$0xff] %vm146, %v233
        %242 = vst.msk [vmem:[%s135 + $0x38] sm:$0xff] %vm146, %v234
        %s243 = sand.u32 %s52, 1
        %s244 = scalar_lea.sflag [#allocation4], %s243
        %s245 = sand.u32 %s52, 1
        %s246 = smul.addr %s245, 64
        %s247 = scalar_lea.vmem [#allocation5], %s246
        // Predicated region
        $region29: #{tpu_custom_call.1} parent=23 // pred_check
          %p248 = pneg %p62
        $region30: #{tpu_custom_call.1} parent=23 // pred_check_branch
          %250 = sbr.rel (%p248) target = $region32
        $region31: #{tpu_custom_call.1} parent=23 // pred_region
          %s251 = smul.u32 4, %s18
          %s253 = ssub.s32 1024, 1024
          %254 = vsyncadd %s244, %s253
          %s255 = smul.addr %s251, 2
          %s256 = smul.addr %s255, 128
          %s257 = scalar_lea.hbm %s1, %s256
          %s258 = sshll.u32 %s247, 4
          %s259 = int_to_ptr.vmem [resolvable:$true] %s258
          %264 = dma.vmem_to_hbm [thread:$0]  %s259, 1024, %s257, %s244, 128, 128, 8
        $region32: #{tpu_custom_call.1} parent=23 // pred_fallthru
          _
      $region24: #{tpu_custom_call.1} parent=5 // pred_fallthru
        _
      %p265 = scmp.le.s32.totalorder 2, %s13
      // Predicated region
      $region33: #{tpu_custom_call.1} parent=5 // pred_check
        %p266 = pneg %p265
      $region34: #{tpu_custom_call.1} parent=5 // pred_check_branch
        %268 = sbr.rel (%p266) target = $region36
      $region35: #{tpu_custom_call.1} parent=5 // pred_region
        %s269 = ssub.s32 %s13, 2
        // Predicated region
        $region37: #{tpu_custom_call.1} parent=35 // pred_check
          %p270 = pneg %p68
        $region38: #{tpu_custom_call.1} parent=35 // pred_check_branch
          %272 = sbr.rel (%p270) target = $region40
        $region39: #{tpu_custom_call.1} parent=35 // pred_region
          %s273 = sand.u32 %s53, 1
          %s274 = scalar_lea.sflag [#allocation4], %s273
          %s275 = sand.u32 %s53, 1
          %s276 = smul.addr %s275, 64
          %s277 = scalar_lea.vmem [#allocation5], %s276
          %278 = dma.done %s274, 1024
        $region40: #{tpu_custom_call.1} parent=35 // pred_fallthru
          _
      $region36: #{tpu_custom_call.1} parent=5 // pred_fallthru
        _
    $region6: #{tpu_custom_call.1} parent=1 // loop_footer
      %s17 = sadd.s32 1, %s13
    $region7: #{tpu_custom_call.1} parent=1 // loop_footer_branch
      %12 = sbr.rel target = $region3
    $region8: #{tpu_custom_call.1} parent=1 // loop_exit
      _
    %279 = vsyncpa [#allocation3], 1
    %s280 = scalar_lea.sflag [#allocation3], 1
    %281 = vsyncpa %s280, 1
    %282 = vsyncpa [#allocation4], 1
    %s283 = scalar_lea.sflag [#allocation4], 1
    %284 = vsyncpa %s283, 1

</llo_original>
